<compile_context>
chip_gen: v5e
topology: v5e:2x2
jax: 0.10.0
libtpu: 0.0.40
codegen_flags: <defaults>
</compile_context>

<pallas_src>
import math

import jax
import jax.numpy as jnp
from jax.experimental import pallas as pl
from jax.experimental.pallas import tpu as pltpu

_LANES = 128
_SUBLANES = 8
_N_CORES = 2               # TC split: pays off on v7x, harmless on 1-TC chips
_CHUNK_ROWS = 256          # in-kernel chunk (multiple of every sublane packing)
_TILE_BYTES_TARGET = 8 << 20   # ~8 MiB of native-dtype HBM bytes per input/step
_SMALL_N = 64 * 1024       # below this, plain fused XLA wins


def _cdiv(a: int, b: int) -> int:
    return -(-a // b)


def _round_up(a: int, b: int) -> int:
    return _cdiv(a, b) * b


def _vmem_limit_bytes() -> int:
    """Generation-aware scoped-VMEM limit: ~3/4 of physical, capped at 96 MiB."""
    phys = 64 << 20  # conservative default = v7x per-TC physical VMEM
    try:
        info = pltpu.get_tpu_info()
        phys = int(getattr(info, "vmem_capacity_bytes", phys)) or phys
    except Exception:
        pass
    return int(min(max(phys * 3 // 4, 32 << 20), 96 << 20))


def _make_rmse_kernel(rows_total: int, tile_rows: int, tiles_per_core: int,
                      chunk_rows: int, n_chunks: int, unroll: int):
    def kernel(yhat_ref, y_ref, o_ref):
        c = pl.program_id(0)   # TensorCore split ("parallel")
        i = pl.program_id(1)   # reduction over this core's tiles ("arbitrary")

        @pl.when(i == 0)
        def _init():
            o_ref[...] = jnp.zeros_like(o_ref)

        # Unclamped global tile index (the index_map clamps; we mask/skip here).
        g_tile = c * tiles_per_core + i
        tile_row0 = g_tile * tile_rows
        valid_rows = rows_total - tile_row0   # scalar; rows fit int32 easily

        def tile_sum(masked: bool):
            # Hoisted once per tile (JAX does not CSE broadcast_in_dim).
            row_base = (jax.lax.broadcasted_iota(jnp.int32, (chunk_rows, _LANES), 0)
                        if masked else None)

            def body(j, acc):
                r0 = pl.multiple_of(j * chunk_rows, chunk_rows)
                a = yhat_ref[pl.ds(r0, chunk_rows), :].astype(jnp.float32)
                b = y_ref[pl.ds(r0, chunk_rows), :].astype(jnp.float32)
                d = a - b
                dsq = d * d
                if masked:
                    # Row-only mask: garbage rows of a partial last block (and
                    # any NaN/Inf they produce) are never selected.
                    dsq = jnp.where(row_base + r0 < valid_rows, dsq, 0.0)
                # (chunk,128) -> (chunk/8, 8, 128) -> (8,128): pure VPU adds.
                return acc + dsq.reshape(-1, _SUBLANES, _LANES).sum(axis=0)

            return jax.lax.fori_loop(
                0, n_chunks, body,
                jnp.zeros((_SUBLANES, _LANES), jnp.float32), unroll=unroll)

        @pl.when(valid_rows >= tile_rows)
        def _full_tile():
            o_ref[...] += tile_sum(False)[None]

        @pl.when(jnp.logical_and(valid_rows > 0, valid_rows < tile_rows))
        def _partial_tile():
            o_ref[...] += tile_sum(True)[None]
        # valid_rows <= 0: clamped duplicate tile -> skip all compute (its DMA
        # repeats the previous block index, so the pipeline does not refetch).

    return kernel


def rmse_loss(yhat: jax.Array, y: jax.Array, eps: float = 1e-6) -> jax.Array:
    assert yhat.shape == y.shape, "yhat and y must have the same shape"
    n_elems = math.prod(yhat.shape)
    assert n_elems > 0
    eps32 = jnp.float32(eps)

    # Tiny inputs: a single fused XLA op beats kernel dispatch + epilogue.
    if n_elems < _SMALL_N:
        d = yhat.astype(jnp.float32) - y.astype(jnp.float32)
        return jnp.sqrt(jnp.mean(d * d) + eps32)

    yhat_f = yhat.reshape(-1)
    y_f = y.reshape(-1)

    rows = n_elems // _LANES
    rem = n_elems % _LANES

    tail_sq = jnp.float32(0.0)
    if rem:
        # <128-element ragged tail: negligible work, done in the epilogue so
        # the kernel never needs a host-side pad of the full arrays.
        ta = yhat_f[rows * _LANES:].astype(jnp.float32)
        tb = y_f[rows * _LANES:].astype(jnp.float32)
        td = ta - tb
        tail_sq = jnp.sum(td * td)
        # TODO(synk): the 128-aligned prefix slice below may still cost one
        # extra HBM pass when XLA materializes it; a fully copy-free ragged
        # path needs a 1-D / partial-last-block kernel layout.
        yhat_f = yhat_f[: rows * _LANES]
        y_f = y_f[: rows * _LANES]

    yhat2d = yhat_f.reshape(rows, _LANES)
    y2d = y_f.reshape(rows, _LANES)

    # Dtype-aware tile sizing against an explicit, generation-aware VMEM limit:
    # 2 inputs x 2 pipeline buffers of tile_bytes must leave headroom.
    itemsize = max(jnp.dtype(yhat.dtype).itemsize, jnp.dtype(y.dtype).itemsize)
    vmem_limit = _vmem_limit_bytes()
    tile_bytes = min(_TILE_BYTES_TARGET, (vmem_limit * 2 // 3) // 4)
    tile_rows_target = max(
        _CHUNK_ROWS,
        (tile_bytes // (_LANES * itemsize)) // _CHUNK_ROWS * _CHUNK_ROWS)

    # Never larger than needed to give both cores real work.
    tile_rows = min(tile_rows_target,
                    _round_up(_cdiv(rows, _N_CORES), _CHUNK_ROWS))
    num_tiles = _cdiv(rows, tile_rows)
    tiles_per_core = _cdiv(num_tiles, _N_CORES)
    n_chunks = tile_rows // _CHUNK_ROWS
    unroll = next(u for u in (8, 4, 2, 1) if n_chunks % u == 0)

    kernel = _make_rmse_kernel(rows, tile_rows, tiles_per_core,
                               _CHUNK_ROWS, n_chunks, unroll)

    def in_map(c, i):
        # Clamp so an odd tile count never produces an out-of-range block; the
        # clamped index equals the core's previous block index, so no refetch.
        return (jnp.minimum(c * tiles_per_core + i, num_tiles - 1), 0)

    partials = pl.pallas_call(
        kernel,
        out_shape=jax.ShapeDtypeStruct((_N_CORES, _SUBLANES, _LANES), jnp.float32),
        grid_spec=pltpu.PrefetchScalarGridSpec(
            num_scalar_prefetch=0,
            grid=(_N_CORES, tiles_per_core),
            in_specs=[
                pl.BlockSpec((tile_rows, _LANES), in_map),
                pl.BlockSpec((tile_rows, _LANES), in_map),
            ],
            out_specs=pl.BlockSpec((1, _SUBLANES, _LANES), lambda c, i: (c, 0, 0)),
        ),
        compiler_params=pltpu.CompilerParams(
            dimension_semantics=("parallel", "arbitrary"),
            vmem_limit_bytes=vmem_limit,
        ),
    )(yhat2d, y2d)

    # Trivial epilogue: one cross-lane reduce of 2*8*128 partials + tail + mean.
    mse = (jnp.sum(partials, dtype=jnp.float32) + tail_sq) / jnp.float32(n_elems)
    return jnp.sqrt(mse + eps32)


if __name__ == "__main__":
    key = jax.random.PRNGKey(0)
    k1, k2, k3, k4, k5, k6 = jax.random.split(key, 6)

    # 1) Module-sized example (NCHW-style tensor), float32 -> tiny-input bypass.
    yhat = jax.random.normal(k1, (2, 4, 16, 16), dtype=jnp.float32)
    y = jax.random.normal(k2, (2, 4, 16, 16), dtype=jnp.float32)
    loss = rmse_loss(yhat, y, eps=1e-6)
    jax.block_until_ready(loss)
    ref = jnp.sqrt(jnp.mean((yhat - y) ** 2) + 1e-6)
    assert jnp.allclose(loss, ref, rtol=1e-5, atol=1e-6), (loss, ref)

    # 2) Kernel path, 128-aligned element count, masked partial tile on core 1.
    a = jax.random.normal(k3, (512, 257), dtype=jnp.float32)
    b = jax.random.normal(k4, (512, 257), dtype=jnp.float32)
    loss2 = rmse_loss(a, b, eps=1e-6)
    jax.block_until_ready(loss2)
    ref2 = jnp.sqrt(jnp.mean((a - b) ** 2) + 1e-6)
    assert jnp.allclose(loss2, ref2, rtol=1e-5, atol=1e-6), (loss2, ref2)

    # 3) Kernel path, bf16 native-dtype streaming + ragged (<128) tail handled
    #    in the epilogue (no host pad) + masked partial tile.
    n3 = 4100 * 128 + 57
    c = jax.random.normal(k5, (n3,), dtype=jnp.bfloat16)
    d = jax.random.normal(k6, (n3,), dtype=jnp.bfloat16)
    loss3 = rmse_loss(c, d, eps=1e-6)
    jax.block_until_ready(loss3)
    diff = c.astype(jnp.float32) - d.astype(jnp.float32)
    ref3 = jnp.sqrt(jnp.mean(diff * diff) + 1e-6)
    assert jnp.allclose(loss3, ref3, rtol=1e-4, atol=1e-6), (loss3, ref3)

    print("KERNEL_OK")
</pallas_src>

<mosaic_0001>
module attributes {stable_mosaic.version = 11 : i64} {
  func.func @kernel(%arg0: i32, %arg1: i32, %arg2: memref<768x128xf32, #tpu.memory_space<vmem>>, %arg3: memref<768x128xf32, #tpu.memory_space<vmem>>, %arg4: memref<1x8x128xf32, #tpu.memory_space<vmem>>) attributes {dimension_semantics = [#tpu.dimension_semantics<parallel>, #tpu.dimension_semantics<arbitrary>], iteration_bounds = array<i64: 2, 1>, scalar_prefetch = 0 : i64, scratch_operands = 0 : i64, tpu.core_type = #tpu.core_type<tc>, window_params = [{transform_indices = @transform_0, window_bounds = array<i64: 768, 128>}, {transform_indices = @transform_1, window_bounds = array<i64: 768, 128>}, {transform_indices = @transform_2, window_bounds = array<i64: 1, 8, 128>}]} {
    %c0_i32 = arith.constant 0 : i32
    %0 = arith.cmpi eq, %arg1, %c0_i32 : i32
    %1 = arith.extui %0 : i1 to i32
    %c0_i32_0 = arith.constant 0 : i32
    %2 = arith.cmpi ne, %1, %c0_i32_0 : i32
    scf.if %2 {
      %cst = arith.constant 0.000000e+00 : f32
      %15 = vector.broadcast %cst : f32 to vector<1x8x128xf32>
      %c0 = arith.constant 0 : index
      %c0_6 = arith.constant 0 : index
      %c0_7 = arith.constant 0 : index
      %16 = vector.load %arg4[%c0, %c0_6, %c0_7] : memref<1x8x128xf32, #tpu.memory_space<vmem>>, vector<1x8x128xf32>
      tpu.vector_store %arg4[%c0, %c0_6, %c0_7], %15 {strides = array<i32>} : memref<1x8x128xf32, #tpu.memory_space<vmem>>, vector<1x8x128xf32>,
    } else {
    }
    %c1_i32 = arith.constant 1 : i32
    %3 = arith.muli %arg0, %c1_i32 : i32
    %4 = arith.addi %3, %arg1 : i32
    %c768_i32 = arith.constant 768 : i32
    %5 = arith.muli %4, %c768_i32 : i32
    %c1028_i32 = arith.constant 1028 : i32
    %6 = arith.subi %c1028_i32, %5 : i32
    %c768_i32_1 = arith.constant 768 : i32
    %7 = arith.cmpi sge, %6, %c768_i32_1 : i32
    %8 = arith.extui %7 : i1 to i32
    %c0_i32_2 = arith.constant 0 : i32
    %9 = arith.cmpi ne, %8, %c0_i32_2 : i32
    scf.if %9 {
      %c0 = arith.constant 0 : index
      %c0_6 = arith.constant 0 : index
      %c0_7 = arith.constant 0 : index
      %15 = vector.load %arg4[%c0, %c0_6, %c0_7] : memref<1x8x128xf32, #tpu.memory_space<vmem>>, vector<1x8x128xf32>
      %cst = arith.constant 0.000000e+00 : f32
      %16 = vector.broadcast %cst : f32 to vector<8x128xf32>
      %c0_i32_8 = arith.constant 0 : i32
      %c3_i32 = arith.constant 3 : i32
      %17 = arith.addi %c0_i32_8, %c3_i32 : i32
      %c1_i32_9 = arith.constant 1 : i32
      %18 = scf.for %arg5 = %c0_i32_8 to %17 step %c1_i32_9 iter_args(%arg6 = %16) -> (vector<8x128xf32>)  : i32 {
        %c256_i32 = arith.constant 256 : i32
        %22 = arith.muli %arg5, %c256_i32 : i32
        %23 = tpu.assume_multiple %22, 256 : i32
        %24 = arith.index_cast %23 : i32 to index
        %c0_14 = arith.constant 0 : index
        %25 = vector.load %arg2[%24, %c0_14] : memref<768x128xf32, #tpu.memory_space<vmem>>, vector<256x128xf32>
        %26 = arith.index_cast %23 : i32 to index
        %c0_15 = arith.constant 0 : index
        %27 = vector.load %arg3[%26, %c0_15] : memref<768x128xf32, #tpu.memory_space<vmem>>, vector<256x128xf32>
        %28 = arith.subf %25, %27 : vector<256x128xf32>
        %29 = arith.mulf %28, %28 : vector<256x128xf32>
        %30 = vector.shape_cast %29 : vector<256x128xf32> to vector<32x8x128xf32>
        %cst_16 = arith.constant dense<0.000000e+00> : vector<8x128xf32>
        %31 = vector.multi_reduction <add>, %30, %cst_16 [0] : vector<32x8x128xf32> to vector<8x128xf32>
        %32 = arith.addf %arg6, %31 : vector<8x128xf32>
        scf.yield %32 : vector<8x128xf32>
      }
      %c3_i32_10 = arith.constant 3 : i32
      %19 = vector.shape_cast %18 : vector<8x128xf32> to vector<1x8x128xf32>
      %20 = arith.addf %15, %19 : vector<1x8x128xf32>
      %c0_11 = arith.constant 0 : index
      %c0_12 = arith.constant 0 : index
      %c0_13 = arith.constant 0 : index
      %21 = vector.load %arg4[%c0_11, %c0_12, %c0_13] : memref<1x8x128xf32, #tpu.memory_space<vmem>>, vector<1x8x128xf32>
      tpu.vector_store %arg4[%c0_11, %c0_12, %c0_13], %20 {strides = array<i32>} : memref<1x8x128xf32, #tpu.memory_space<vmem>>, vector<1x8x128xf32>,
    } else {
    }
    %c0_i32_3 = arith.constant 0 : i32
    %10 = arith.cmpi sgt, %6, %c0_i32_3 : i32
    %c768_i32_4 = arith.constant 768 : i32
    %11 = arith.cmpi slt, %6, %c768_i32_4 : i32
    %12 = arith.andi %10, %11 : i1
    %13 = arith.extui %12 : i1 to i32
    %c0_i32_5 = arith.constant 0 : i32
    %14 = arith.cmpi ne, %13, %c0_i32_5 : i32
    scf.if %14 {
      %c0 = arith.constant 0 : index
      %c0_6 = arith.constant 0 : index
      %c0_7 = arith.constant 0 : index
      %15 = vector.load %arg4[%c0, %c0_6, %c0_7] : memref<1x8x128xf32, #tpu.memory_space<vmem>>, vector<1x8x128xf32>
      %16 = tpu.iota {dimensions = array<i32: 0>} : vector<256x128xi32>
      %cst = arith.constant 0.000000e+00 : f32
      %17 = vector.broadcast %cst : f32 to vector<8x128xf32>
      %c0_i32_8 = arith.constant 0 : i32
      %c3_i32 = arith.constant 3 : i32
      %18 = arith.addi %c0_i32_8, %c3_i32 : i32
      %c1_i32_9 = arith.constant 1 : i32
      %19 = scf.for %arg5 = %c0_i32_8 to %18 step %c1_i32_9 iter_args(%arg6 = %17) -> (vector<8x128xf32>)  : i32 {
        %c256_i32 = arith.constant 256 : i32
        %23 = arith.muli %arg5, %c256_i32 : i32
        %24 = tpu.assume_multiple %23, 256 : i32
        %25 = arith.index_cast %24 : i32 to index
        %c0_14 = arith.constant 0 : index
        %26 = vector.load %arg2[%25, %c0_14] : memref<768x128xf32, #tpu.memory_space<vmem>>, vector<256x128xf32>
        %27 = arith.index_cast %24 : i32 to index
        %c0_15 = arith.constant 0 : index
        %28 = vector.load %arg3[%27, %c0_15] : memref<768x128xf32, #tpu.memory_space<vmem>>, vector<256x128xf32>
        %29 = arith.subf %26, %28 : vector<256x128xf32>
        %30 = arith.mulf %29, %29 : vector<256x128xf32>
        %31 = vector.broadcast %24 : i32 to vector<256x128xi32>
        %32 = arith.addi %16, %31 : vector<256x128xi32>
        %33 = vector.broadcast %6 : i32 to vector<256x128xi32>
        %34 = arith.cmpi slt, %32, %33 : vector<256x128xi32>
        %cst_16 = arith.constant 0.000000e+00 : f32
        %35 = vector.broadcast %cst_16 : f32 to vector<256x128xf32>
        %36 = arith.select %34, %30, %35 : vector<256x128xi1>, vector<256x128xf32>
        %37 = vector.shape_cast %36 : vector<256x128xf32> to vector<32x8x128xf32>
        %cst_17 = arith.constant dense<0.000000e+00> : vector<8x128xf32>
        %38 = vector.multi_reduction <add>, %37, %cst_17 [0] : vector<32x8x128xf32> to vector<8x128xf32>
        %39 = arith.addf %arg6, %38 : vector<8x128xf32>
        scf.yield %39 : vector<8x128xf32>
      }
      %c3_i32_10 = arith.constant 3 : i32
      %20 = vector.shape_cast %19 : vector<8x128xf32> to vector<1x8x128xf32>
      %21 = arith.addf %15, %20 : vector<1x8x128xf32>
      %c0_11 = arith.constant 0 : index
      %c0_12 = arith.constant 0 : index
      %c0_13 = arith.constant 0 : index
      %22 = vector.load %arg4[%c0_11, %c0_12, %c0_13] : memref<1x8x128xf32, #tpu.memory_space<vmem>>, vector<1x8x128xf32>
      tpu.vector_store %arg4[%c0_11, %c0_12, %c0_13], %21 {strides = array<i32>} : memref<1x8x128xf32, #tpu.memory_space<vmem>>, vector<1x8x128xf32>,
    } else {
    }
    return
  }
  func.func @transform_0(%arg0: i32, %arg1: i32) -> (i32, i32) {
    %c1_i32 = arith.constant 1 : i32
    %0 = arith.muli %arg0, %c1_i32 : i32
    %1 = arith.addi %0, %arg1 : i32
    %c1_i32_0 = arith.constant 1 : i32
    %2 = arith.minsi %1, %c1_i32_0 : i32
    %c0_i32 = arith.constant 0 : i32
    %c0_i32_1 = arith.constant 0 : i32
    return %2, %c0_i32 : i32, i32
  }
  func.func @transform_1(%arg0: i32, %arg1: i32) -> (i32, i32) {
    %c1_i32 = arith.constant 1 : i32
    %0 = arith.muli %arg0, %c1_i32 : i32
    %1 = arith.addi %0, %arg1 : i32
    %c1_i32_0 = arith.constant 1 : i32
    %2 = arith.minsi %1, %c1_i32_0 : i32
    %c0_i32 = arith.constant 0 : i32
    %c0_i32_1 = arith.constant 0 : i32
    return %2, %c0_i32 : i32, i32
  }
  func.func @transform_2(%arg0: i32, %arg1: i32) -> (i32, i32, i32) {
    %c0_i32 = arith.constant 0 : i32
    %c0_i32_0 = arith.constant 0 : i32
    %c0_i32_1 = arith.constant 0 : i32
    return %arg0, %c0_i32, %c0_i32_0 : i32, i32, i32
  }
}

</mosaic_0001>

<llo_original>
// kernel: tpu_custom_call.1
$region0: #{tpu_custom_call.1}
  #allocation0 [shape = 'u32[]', space=smem, size = 0x4, offset = 0x4, fixed_abs, tag = 'smem constant byte address 0x4 - core index']
  #allocation1 [shape = 'u32[72,128]{1,0:T(1,128)}', space=vmem, size = 0x9000, scoped, tag = 'internal scratch']
  %s0 = inlined_call_operand.hbm [shape: f32[1028,128], index: 0, kind: input, shape index: {}]
  %s1 = inlined_call_operand.hbm [shape: f32[1028,128], index: 1, kind: input, shape index: {}]
  %s2 = inlined_call_operand.hbm [shape: f32[2,8,128], index: 2, kind: output, shape index: {}]
  %s3 = sld [smem:[#allocation0]]
  $region75: #{tpu_custom_call.1} parent=0
    _
  %s5 = ssub.s32 1, %s3
  %s6 = scalar_select 0, %s5, %s3
  $region1: #{tpu_custom_call.1} parent=0
    #allocation2 [shape = 'u8[786432]{0}', space=vmem, size = 0xc0000, scoped, tag = 'input window, operand 0']
    #allocation3 [shape = 's32[2]{0}', space=sflag, size = 0x8, scoped, tag = 'scoped memory for tpu_custom_call.1']
    #allocation4 [shape = 's32[2]{0}', space=sflag, size = 0x8, scoped, tag = 'scoped memory for tpu_custom_call.1']
    #allocation5 [shape = 'u8[786432]{0}', space=vmem, size = 0xc0000, scoped, tag = 'input window, operand 1']
    #allocation6 [shape = 's32[2]{0}', space=sflag, size = 0x8, scoped, tag = 'scoped memory for tpu_custom_call.1']
    #allocation7 [shape = 'u8[8192]{0}', space=vmem, size = 0x2000, scoped, tag = 'output window, operand 0']
    %7 = vsyncpa [#allocation3], 0
    %s8 = scalar_lea.sflag [#allocation3], 1
    %9 = vsyncpa %s8, 0
    %10 = vsyncpa [#allocation6], 0
    %s11 = scalar_lea.sflag [#allocation6], 1
    %12 = vsyncpa %s11, 0
    %13 = vsyncpa [#allocation4], 0
    %s14 = scalar_lea.sflag [#allocation4], 1
    %15 = vsyncpa %s14, 0
    loop: start=0, step=1, limit=4
    $region2: #{tpu_custom_call.1} parent=1 // loop_pre_header
      _
    $region3: #{tpu_custom_call.1} parent=1 // loop_header
      %s17 = sphi 0, %s21
      %p18 = scmp.ge.s32.totalorder %s17, 4
      %s24 = sphi 0, %s36
      %s25 = sphi 0, %s32
      %s26 = sphi 0, %s24
      %s27 = sphi 0, %s25
      %s28 = sphi 0, %s26
      %s29 = sphi 0, %s27
      %s45 = sphi 0, %s47
      %s48 = sphi 0, %s45
      %s49 = sphi 0, %s48
      %s65 = sphi 0, %s49
      %s77 = sphi 0, %s79
      %s80 = sphi 0, %s77
      %s81 = sphi 0, %s80
      %s97 = sphi 0, %s81
      %s103 = sphi 0, %s105
      %s106 = sphi 0, %s103
      %s107 = sphi 0, %s106
      %s123 = sphi 0, %s107
    $region4: #{tpu_custom_call.1} parent=1 // loop_header_branch
      %20 = sbr.rel (%p18) target = $region8
    $region5: #{tpu_custom_call.1} parent=1 // loop_body
      %s22 = ssub.s32 %s17, 1
      %s23 = ssub.s32 %s17, 2
      %s30 = sadd.s32 1, %s25
      %p31 = scmp.ge.s32.totalorder %s30, 1
      %s32 = scalar_select %p31, 0, %s30
      %s33 = sadd.s32 1, %s24
      %s34 = scalar_select %p31, %s33, %s24
      %p35 = scmp.ge.s32.totalorder %s34, 2
      %s36 = scalar_select %p35, 0, %s34
      %s37 = sadd.s32 %s24, %s25
      %p38 = scmp.lt.s32.totalorder %s37, 1
      %s39 = scalar_select %p38, %s37, 1
      %s40 = sadd.s32 %s36, %s32
      %p41 = scmp.lt.s32.totalorder %s40, 1
      %s42 = scalar_select %p41, %s40, 1
      %s43 = ssub.s32 %s39, %s42
      %p44 = scmp.eq.s32.totalorder %s43, 0
      %s46 = sadd.s32 %s45, 1
      %s47 = scalar_select %p44, %s45, %s46
      %p50 = pneg %p44
      %p51 = scmp.eq.s32.totalorder %s17, 1
      %p52 = por %p50, %p51
      %p53 = scmp.ne.s32.totalorder %s45, %s48
      %p54 = scmp.eq.s32.totalorder %s17, 0
      %p55 = por %p53, %p54
      %p56 = scmp.ne.s32.totalorder %s45, %s48
      %p57 = scmp.eq.s32.totalorder %s22, 1
      %p58 = por %p56, %p57
      %p59 = scmp.ne.s32.totalorder %s48, %s49
      %p60 = scmp.eq.s32.totalorder %s22, 0
      %p61 = por %p59, %p60
      %p62 = scmp.ne.s32.totalorder %s48, %s49
      %p63 = scmp.eq.s32.totalorder %s23, 1
      %p64 = por %p62, %p63
      %p66 = scmp.ne.s32.totalorder %s49, %s65
      %p67 = scmp.eq.s32.totalorder %s23, 0
      %p68 = por %p66, %p67
      %s69 = sadd.s32 %s24, %s25
      %p70 = scmp.lt.s32.totalorder %s69, 1
      %s71 = scalar_select %p70, %s69, 1
      %s72 = sadd.s32 %s36, %s32
      %p73 = scmp.lt.s32.totalorder %s72, 1
      %s74 = scalar_select %p73, %s72, 1
      %s75 = ssub.s32 %s71, %s74
      %p76 = scmp.eq.s32.totalorder %s75, 0
      %s78 = sadd.s32 %s77, 1
      %s79 = scalar_select %p76, %s77, %s78
      %p82 = pneg %p76
      %p83 = scmp.eq.s32.totalorder %s17, 1
      %p84 = por %p82, %p83
      %p85 = scmp.ne.s32.totalorder %s77, %s80
      %p86 = scmp.eq.s32.totalorder %s17, 0
      %p87 = por %p85, %p86
      %p88 = scmp.ne.s32.totalorder %s77, %s80
      %p89 = scmp.eq.s32.totalorder %s22, 1
      %p90 = por %p88, %p89
      %p91 = scmp.ne.s32.totalorder %s80, %s81
      %p92 = scmp.eq.s32.totalorder %s22, 0
      %p93 = por %p91, %p92
      %p94 = scmp.ne.s32.totalorder %s80, %s81
      %p95 = scmp.eq.s32.totalorder %s23, 1
      %p96 = por %p94, %p95
      %p98 = scmp.ne.s32.totalorder %s81, %s97
      %p99 = scmp.eq.s32.totalorder %s23, 0
      %p100 = por %p98, %p99
      %s101 = ssub.s32 %s24, %s36
      %p102 = scmp.eq.s32.totalorder %s101, 0
      %s104 = sadd.s32 %s103, 1
      %s105 = scalar_select %p102, %s103, %s104
      %p108 = pneg %p102
      %p109 = scmp.eq.s32.totalorder %s17, 1
      %p110 = por %p108, %p109
      %p111 = scmp.ne.s32.totalorder %s103, %s106
      %p112 = scmp.eq.s32.totalorder %s17, 0
      %p113 = por %p111, %p112
      %p114 = scmp.ne.s32.totalorder %s103, %s106
      %p115 = scmp.eq.s32.totalorder %s22, 1
      %p116 = por %p114, %p115
      %p117 = scmp.ne.s32.totalorder %s106, %s107
      %p118 = scmp.eq.s32.totalorder %s22, 0
      %p119 = por %p117, %p118
      %p120 = scmp.ne.s32.totalorder %s106, %s107
      %p121 = scmp.eq.s32.totalorder %s23, 1
      %p122 = por %p120, %p121
      %p124 = scmp.ne.s32.totalorder %s107, %s123
      %p125 = scmp.eq.s32.totalorder %s23, 0
      %p126 = por %p124, %p125
      %p127 = scmp.le.s32.totalorder 1, %s17
      %p128 = scmp.lt.s32.totalorder %s17, 3
      %p129 = pnand %p127, %p128
      %p130 = pneg %p129
      // Predicated region
      $region9: #{tpu_custom_call.1} parent=5 // pred_check
        _
      $region10: #{tpu_custom_call.1} parent=5 // pred_check_branch
        %132 = sbr.rel (%p129) target = $region12
      $region11: #{tpu_custom_call.1} parent=5 // pred_region
        %s133 = ssub.s32 %s17, 1
      $region12: #{tpu_custom_call.1} parent=5 // pred_fallthru
        _
      %p134 = scmp.lt.s32.totalorder %s17, 2
      // Predicated region
      $region13: #{tpu_custom_call.1} parent=5 // pred_check
        %p135 = pneg %p134
      $region14: #{tpu_custom_call.1} parent=5 // pred_check_branch
        %137 = sbr.rel (%p135) target = $region16
      $region15: #{tpu_custom_call.1} parent=5 // pred_region
        // Predicated region
        $region17: #{tpu_custom_call.1} parent=15 // pred_check
          %p138 = pneg %p55
        $region18: #{tpu_custom_call.1} parent=15 // pred_check_branch
          %140 = sbr.rel (%p138) target = $region20
        $region19: #{tpu_custom_call.1} parent=15 // pred_region
          %s141 = sand.u32 %s45, 1
          %s142 = scalar_lea.sflag [#allocation3], %s141
          %s143 = sand.u32 %s45, 1
          %s144 = smul.addr %s143, 768
          %s145 = scalar_lea.vmem [#allocation2], %s144
          %s146 = sadd.s32 %s24, %s25
          %p147 = scmp.lt.s32.totalorder %s146, 1
          %s148 = scalar_select %p147, %s146, 1
          %s149 = smul.u32 96, %s148
          %s150 = ssub.s32 129, %s149
          %p151 = scmp.lt.s32.totalorder %s150, 96
          %s152 = scalar_select %p151, %s150, 96
          %s153 = smul.u32 8, %s152
          %s154 = ssub.s32 768, %s153
          %s155 = sshll.u32 %s154, 4
          %156 = vsyncadd %s142, %s155
          %p157 = scmp.ne.s32.totalorder 0, %s153
          %s158 = smul.addr %s149, 8
          %s159 = scalar_lea.hbm %s0, %s158
          %s160 = smul.u32 8, %s152
          %s161 = sshll.u32 %s159, 4
          %s162 = int_to_ptr.hbm [resolvable:$true] %s161
          %s163 = sshll.u32 %s145, 4
          %s164 = int_to_ptr.vmem [resolvable:$true] %s163
          %s165 = sshll.u32 %s160, 4
          %169 = dma.hbm_to_vmem [thread:$0]  (%p157), %s162, %s165, %s164, %s142, 128, 128, 8
        $region20: #{tpu_custom_call.1} parent=15 // pred_fallthru
          _
        // Predicated region
        $region21: #{tpu_custom_call.1} parent=15 // pred_check
          %p170 = pneg %p87
        $region22: #{tpu_custom_call.1} parent=15 // pred_check_branch
          %172 = sbr.rel (%p170) target = $region24
        $region23: #{tpu_custom_call.1} parent=15 // pred_region
          %s173 = sand.u32 %s77, 1
          %s174 = scalar_lea.sflag [#allocation6], %s173
          %s175 = sand.u32 %s77, 1
          %s176 = smul.addr %s175, 768
          %s177 = scalar_lea.vmem [#allocation5], %s176
          %s178 = sadd.s32 %s24, %s25
          %p179 = scmp.lt.s32.totalorder %s178, 1
          %s180 = scalar_select %p179, %s178, 1
          %s181 = smul.u32 96, %s180
          %s182 = ssub.s32 129, %s181
          %p183 = scmp.lt.s32.totalorder %s182, 96
          %s184 = scalar_select %p183, %s182, 96
          %s185 = smul.u32 8, %s184
          %s186 = ssub.s32 768, %s185
          %s187 = sshll.u32 %s186, 4
          %188 = vsyncadd %s174, %s187
          %p189 = scmp.ne.s32.totalorder 0, %s185
          %s190 = smul.addr %s181, 8
          %s191 = scalar_lea.hbm %s1, %s190
          %s192 = smul.u32 8, %s184
          %s193 = sshll.u32 %s191, 4
          %s194 = int_to_ptr.hbm [resolvable:$true] %s193
          %s195 = sshll.u32 %s177, 4
          %s196 = int_to_ptr.vmem [resolvable:$true] %s195
          %s197 = sshll.u32 %s192, 4
          %201 = dma.hbm_to_vmem [thread:$0]  (%p189), %s194, %s197, %s196, %s174, 128, 128, 8
        $region24: #{tpu_custom_call.1} parent=15 // pred_fallthru
          _
      $region16: #{tpu_custom_call.1} parent=5 // pred_fallthru
        _
      %p202 = scmp.le.s32.totalorder 1, %s17
      %p203 = scmp.lt.s32.totalorder %s17, 3
      %p204 = pnand %p202, %p203
      %p205 = pneg %p204
      // Predicated region
      $region25: #{tpu_custom_call.1} parent=5 // pred_check
        _
      $region26: #{tpu_custom_call.1} parent=5 // pred_check_branch
        %207 = sbr.rel (%p204) target = $region28
      $region27: #{tpu_custom_call.1} parent=5 // pred_region
        %s208 = ssub.s32 %s17, 1
        %s209 = sand.u32 %s48, 1
        %s210 = scalar_lea.sflag [#allocation3], %s209
        %s211 = sand.u32 %s48, 1
        %s212 = smul.addr %s211, 768
        %s213 = scalar_lea.vmem [#allocation2], %s212
        // Predicated region
        $region29: #{tpu_custom_call.1} parent=27 // pred_check
          %p214 = pneg %p61
        $region30: #{tpu_custom_call.1} parent=27 // pred_check_branch
          %216 = sbr.rel (%p214) target = $region32
        $region31: #{tpu_custom_call.1} parent=27 // pred_region
          %218 = dma.done %s210, 12288
        $region32: #{tpu_custom_call.1} parent=27 // pred_fallthru
          _
        %s219 = sand.u32 %s80, 1
        %s220 = scalar_lea.sflag [#allocation6], %s219
        %s221 = sand.u32 %s80, 1
        %s222 = smul.addr %s221, 768
        %s223 = scalar_lea.vmem [#allocation5], %s222
        // Predicated region
        $region33: #{tpu_custom_call.1} parent=27 // pred_check
          %p224 = pneg %p93
        $region34: #{tpu_custom_call.1} parent=27 // pred_check_branch
          %226 = sbr.rel (%p224) target = $region36
        $region35: #{tpu_custom_call.1} parent=27 // pred_region
          %228 = dma.done %s220, 12288
        $region36: #{tpu_custom_call.1} parent=27 // pred_fallthru
          _
        %s229 = sand.u32 %s48, 1
        %s230 = scalar_lea.sflag [#allocation3], %s229
        %s231 = sand.u32 %s48, 1
        %s232 = smul.addr %s231, 768
        %s233 = scalar_lea.vmem [#allocation2], %s232
        %p234 = pneg %p61
        %p235 = pneg %p58
        %s236 = sand.u32 %s80, 1
        %s237 = scalar_lea.sflag [#allocation6], %s236
        %s238 = sand.u32 %s80, 1
        %s239 = smul.addr %s238, 768
        %s240 = scalar_lea.vmem [#allocation5], %s239
        %p241 = pneg %p93
        %p242 = pneg %p90
        %p243 = pneg %p119
        %p244 = pneg %p116
        %s245 = sand.u32 %s106, 1
        %s246 = scalar_lea.sflag [#allocation4], %s245
        %s247 = sand.u32 %s106, 1
        %s248 = smul.addr %s247, 8
        %s249 = scalar_lea.vmem [#allocation7], %s248
        %s250 = sadd.s32 %s26, %s27
        %p251 = scmp.lt.s32.totalorder %s250, 1
        %s252 = scalar_select %p251, %s250, 1
        %s253 = smul.u32 96, %s252
        %s254 = ssub.s32 129, %s253
        %p255 = scmp.lt.s32.totalorder %s254, 96
        %s256 = scalar_select %p255, %s254, 96
        %s257 = smul.u32 8, %s256
        %s258 = sadd.s32 %s26, %s27
        %p259 = scmp.lt.s32.totalorder %s258, 1
        %s260 = scalar_select %p259, %s258, 1
        %s261 = smul.u32 96, %s260
        %s262 = ssub.s32 129, %s261
        %p263 = scmp.lt.s32.totalorder %s262, 96
        %s264 = scalar_select %p263, %s262, 96
        %s265 = smul.u32 8, %s264
        %p266 = scmp.eq.s32.totalorder %s27, 0
        // Predicated region
        $region37: #{tpu_custom_call.1} parent=27 // pred_check
          %p267 = pneg %p266
        $region38: #{tpu_custom_call.1} parent=27 // pred_check_branch
          %269 = sbr.rel (%p267) target = $region40
        $region39: #{tpu_custom_call.1} parent=27 // pred_region
          %270 = vst [vmem:[%s249] sm:$0xff] 0.0
        $region40: #{tpu_custom_call.1} parent=27 // pred_fallthru
          _
        %s271 = sadd.s32 %s26, %s27
        %s272 = smul.u32 %s271, 768
        %s273 = ssub.s32 1028, %s272
        %p274 = scmp.ge.s32.totalorder %s273, 768
        // Predicated region
        $region41: #{tpu_custom_call.1} parent=27 // pred_check
          %p275 = pneg %p274
        $region42: #{tpu_custom_call.1} parent=27 // pred_check_branch
          %277 = sbr.rel (%p275) target = $region44
        $region43: #{tpu_custom_call.1} parent=27 // pred_region
          %v278 = vld [vmem:[%s249] sm:$0xff]
          loop: start=0, step=1, limit=3
          $region45: #{tpu_custom_call.1} parent=43 // loop_pre_header
            _
          $region46: #{tpu_custom_call.1} parent=43 // loop_header
            %s280 = sphi 0, %s284
            %p281 = scmp.ge.s32.totalorder %s280, 3
            %v285 = vphi 0.0, %v448
          $region47: #{tpu_custom_call.1} parent=43 // loop_header_branch
            %283 = sbr.rel (%p281) target = $region51
          $region48: #{tpu_custom_call.1} parent=43 // loop_body
            %s286 = smul.u32 %s280, 256
            %s287 = scalar_lea.vmem %s213, %s286 [#allocation2]
            %v288 = vld [vmem:[%s287] sm:$0xff]
            %v289 = vld [vmem:[%s287 + $0x8] sm:$0xff]
            %v290 = vld [vmem:[%s287 + $0x10] sm:$0xff]
            %v291 = vld [vmem:[%s287 + $0x18] sm:$0xff]
            %v292 = vld [vmem:[%s287 + $0x20] sm:$0xff]
            %v293 = vld [vmem:[%s287 + $0x28] sm:$0xff]
            %v294 = vld [vmem:[%s287 + $0x30] sm:$0xff]
            %v295 = vld [vmem:[%s287 + $0x38] sm:$0xff]
            %v296 = vld [vmem:[%s287 + $0x40] sm:$0xff]
            %v297 = vld [vmem:[%s287 + $0x48] sm:$0xff]
            %v298 = vld [vmem:[%s287 + $0x50] sm:$0xff]
            %v299 = vld [vmem:[%s287 + $0x58] sm:$0xff]
            %v300 = vld [vmem:[%s287 + $0x60] sm:$0xff]
            %v301 = vld [vmem:[%s287 + $0x68] sm:$0xff]
            %v302 = vld [vmem:[%s287 + $0x70] sm:$0xff]
            %v303 = vld [vmem:[%s287 + $0x78] sm:$0xff]
            %v304 = vld [vmem:[%s287 + $0x80] sm:$0xff]
            %v305 = vld [vmem:[%s287 + $0x88] sm:$0xff]
            %v306 = vld [vmem:[%s287 + $0x90] sm:$0xff]
            %v307 = vld [vmem:[%s287 + $0x98] sm:$0xff]
            %v308 = vld [vmem:[%s287 + $0xa0] sm:$0xff]
            %v309 = vld [vmem:[%s287 + $0xa8] sm:$0xff]
            %v310 = vld [vmem:[%s287 + $0xb0] sm:$0xff]
            %v311 = vld [vmem:[%s287 + $0xb8] sm:$0xff]
            %v312 = vld [vmem:[%s287 + $0xc0] sm:$0xff]
            %v313 = vld [vmem:[%s287 + $0xc8] sm:$0xff]
            %v314 = vld [vmem:[%s287 + $0xd0] sm:$0xff]
            %v315 = vld [vmem:[%s287 + $0xd8] sm:$0xff]
            %v316 = vld [vmem:[%s287 + $0xe0] sm:$0xff]
            %v317 = vld [vmem:[%s287 + $0xe8] sm:$0xff]
            %v318 = vld [vmem:[%s287 + $0xf0] sm:$0xff]
            %v319 = vld [vmem:[%s287 + $0xf8] sm:$0xff]
            %s320 = scalar_lea.vmem %s223, %s286 [#allocation5]
            %v321 = vld [vmem:[%s320] sm:$0xff]
            %v322 = vld [vmem:[%s320 + $0x8] sm:$0xff]
            %v323 = vld [vmem:[%s320 + $0x10] sm:$0xff]
            %v324 = vld [vmem:[%s320 + $0x18] sm:$0xff]
            %v325 = vld [vmem:[%s320 + $0x20] sm:$0xff]
            %v326 = vld [vmem:[%s320 + $0x28] sm:$0xff]
            %v327 = vld [vmem:[%s320 + $0x30] sm:$0xff]
            %v328 = vld [vmem:[%s320 + $0x38] sm:$0xff]
            %v329 = vld [vmem:[%s320 + $0x40] sm:$0xff]
            %v330 = vld [vmem:[%s320 + $0x48] sm:$0xff]
            %v331 = vld [vmem:[%s320 + $0x50] sm:$0xff]
            %v332 = vld [vmem:[%s320 + $0x58] sm:$0xff]
            %v333 = vld [vmem:[%s320 + $0x60] sm:$0xff]
            %v334 = vld [vmem:[%s320 + $0x68] sm:$0xff]
            %v335 = vld [vmem:[%s320 + $0x70] sm:$0xff]
            %v336 = vld [vmem:[%s320 + $0x78] sm:$0xff]
            %v337 = vld [vmem:[%s320 + $0x80] sm:$0xff]
            %v338 = vld [vmem:[%s320 + $0x88] sm:$0xff]
            %v339 = vld [vmem:[%s320 + $0x90] sm:$0xff]
            %v340 = vld [vmem:[%s320 + $0x98] sm:$0xff]
            %v341 = vld [vmem:[%s320 + $0xa0] sm:$0xff]
            %v342 = vld [vmem:[%s320 + $0xa8] sm:$0xff]
            %v343 = vld [vmem:[%s320 + $0xb0] sm:$0xff]
            %v344 = vld [vmem:[%s320 + $0xb8] sm:$0xff]
            %v345 = vld [vmem:[%s320 + $0xc0] sm:$0xff]
            %v346 = vld [vmem:[%s320 + $0xc8] sm:$0xff]
            %v347 = vld [vmem:[%s320 + $0xd0] sm:$0xff]
            %v348 = vld [vmem:[%s320 + $0xd8] sm:$0xff]
            %v349 = vld [vmem:[%s320 + $0xe0] sm:$0xff]
            %v350 = vld [vmem:[%s320 + $0xe8] sm:$0xff]
            %v351 = vld [vmem:[%s320 + $0xf0] sm:$0xff]
            %v352 = vld [vmem:[%s320 + $0xf8] sm:$0xff]
            %v353 = vsub.f32 %v288, %v321
            %v354 = vsub.f32 %v289, %v322
            %v355 = vsub.f32 %v290, %v323
            %v356 = vsub.f32 %v291, %v324
            %v357 = vsub.f32 %v292, %v325
            %v358 = vsub.f32 %v293, %v326
            %v359 = vsub.f32 %v294, %v327
            %v360 = vsub.f32 %v295, %v328
            %v361 = vsub.f32 %v296, %v329
            %v362 = vsub.f32 %v297, %v330
            %v363 = vsub.f32 %v298, %v331
            %v364 = vsub.f32 %v299, %v332
            %v365 = vsub.f32 %v300, %v333
            %v366 = vsub.f32 %v301, %v334
            %v367 = vsub.f32 %v302, %v335
            %v368 = vsub.f32 %v303, %v336
            %v369 = vsub.f32 %v304, %v337
            %v370 = vsub.f32 %v305, %v338
            %v371 = vsub.f32 %v306, %v339
            %v372 = vsub.f32 %v307, %v340
            %v373 = vsub.f32 %v308, %v341
            %v374 = vsub.f32 %v309, %v342
            %v375 = vsub.f32 %v310, %v343
            %v376 = vsub.f32 %v311, %v344
            %v377 = vsub.f32 %v312, %v345
            %v378 = vsub.f32 %v313, %v346
            %v379 = vsub.f32 %v314, %v347
            %v380 = vsub.f32 %v315, %v348
            %v381 = vsub.f32 %v316, %v349
            %v382 = vsub.f32 %v317, %v350
            %v383 = vsub.f32 %v318, %v351
            %v384 = vsub.f32 %v319, %v352
            %v385 = vmul.f32 %v353, %v353
            %v386 = vmul.f32 %v354, %v354
            %v387 = vmul.f32 %v355, %v355
            %v388 = vmul.f32 %v356, %v356
            %v389 = vmul.f32 %v357, %v357
            %v390 = vmul.f32 %v358, %v358
            %v391 = vmul.f32 %v359, %v359
            %v392 = vmul.f32 %v360, %v360
            %v393 = vmul.f32 %v361, %v361
            %v394 = vmul.f32 %v362, %v362
            %v395 = vmul.f32 %v363, %v363
            %v396 = vmul.f32 %v364, %v364
            %v397 = vmul.f32 %v365, %v365
            %v398 = vmul.f32 %v366, %v366
            %v399 = vmul.f32 %v367, %v367
            %v400 = vmul.f32 %v368, %v368
            %v401 = vmul.f32 %v369, %v369
            %v402 = vmul.f32 %v370, %v370
            %v403 = vmul.f32 %v371, %v371
            %v404 = vmul.f32 %v372, %v372
            %v405 = vmul.f32 %v373, %v373
            %v406 = vmul.f32 %v374, %v374
            %v407 = vmul.f32 %v375, %v375
            %v408 = vmul.f32 %v376, %v376
            %v409 = vmul.f32 %v377, %v377
            %v410 = vmul.f32 %v378, %v378
            %v411 = vmul.f32 %v379, %v379
            %v412 = vmul.f32 %v380, %v380
            %v413 = vmul.f32 %v381, %v381
            %v414 = vmul.f32 %v382, %v382
            %v415 = vmul.f32 %v383, %v383
            %v416 = vmul.f32 %v384, %v384
            %v417 = vadd.f32 %v385, %v386
            %v418 = vadd.f32 %v417, %v387
            %v419 = vadd.f32 %v418, %v388
            %v420 = vadd.f32 %v419, %v389
            %v421 = vadd.f32 %v420, %v390
            %v422 = vadd.f32 %v421, %v391
            %v423 = vadd.f32 %v422, %v392
            %v424 = vadd.f32 %v423, %v393
            %v425 = vadd.f32 %v424, %v394
            %v426 = vadd.f32 %v425, %v395
            %v427 = vadd.f32 %v426, %v396
            %v428 = vadd.f32 %v427, %v397
            %v429 = vadd.f32 %v428, %v398
            %v430 = vadd.f32 %v429, %v399
            %v431 = vadd.f32 %v430, %v400
            %v432 = vadd.f32 %v431, %v401
            %v433 = vadd.f32 %v432, %v402
            %v434 = vadd.f32 %v433, %v403
            %v435 = vadd.f32 %v434, %v404
            %v436 = vadd.f32 %v435, %v405
            %v437 = vadd.f32 %v436, %v406
            %v438 = vadd.f32 %v437, %v407
            %v439 = vadd.f32 %v438, %v408
            %v440 = vadd.f32 %v439, %v409
            %v441 = vadd.f32 %v440, %v410
            %v442 = vadd.f32 %v441, %v411
            %v443 = vadd.f32 %v442, %v412
            %v444 = vadd.f32 %v443, %v413
            %v445 = vadd.f32 %v444, %v414
            %v446 = vadd.f32 %v445, %v415
            %v447 = vadd.f32 %v446, %v416
            %v448 = vadd.f32 %v285, %v447
          $region49: #{tpu_custom_call.1} parent=43 // loop_footer
            %s284 = sadd.s32 1, %s280
          $region50: #{tpu_custom_call.1} parent=43 // loop_footer_branch
            %279 = sbr.rel target = $region46
          $region51: #{tpu_custom_call.1} parent=43 // loop_exit
            _
          %v449 = vadd.f32 %v278, %v285
          %450 = vst [vmem:[%s249] sm:$0xff] %v449
        $region44: #{tpu_custom_call.1} parent=27 // pred_fallthru
          _
        %p451 = scmp.gt.s32.totalorder %s273, 0
        %p452 = scmp.lt.s32.totalorder %s273, 768
        %p453 = pnand %p451, %p452
        %p454 = pneg %p453
        // Predicated region
        $region52: #{tpu_custom_call.1} parent=27 // pred_check
          _
        $region53: #{tpu_custom_call.1} parent=27 // pred_check_branch
          %456 = sbr.rel (%p453) target = $region55
        $region54: #{tpu_custom_call.1} parent=27 // pred_region
          %v457 = vld [vmem:[%s249] sm:$0xff]
          %v458 = vlaneseq
          %v459 = vshrl.u32 %v458, 7
          %v460 = vadd.s32 %v459, 8
          %v461 = vadd.s32 %v459, 16
          %v462 = vadd.s32 %v459, 24
          %v463 = vadd.s32 %v459, 32
          %v464 = vadd.s32 %v459, 40
          %v465 = vadd.s32 %v459, 48
          %v466 = vadd.s32 %v459, 56
          %v467 = vadd.s32 %v459, 64
          %v468 = vadd.s32 %v459, 72
          %v469 = vadd.s32 %v459, 80
          %v470 = vadd.s32 %v459, 88
          %v471 = vadd.s32 %v459, 96
          %v472 = vadd.s32 %v459, 104
          %v473 = vadd.s32 %v459, 112
          %v474 = vadd.s32 %v459, 120
          %v475 = vadd.s32 %v459, 128
          %v476 = vadd.s32 %v459, 136
          %v477 = vadd.s32 %v459, 144
          %v478 = vadd.s32 %v459, 152
          %v479 = vadd.s32 %v459, 160
          %v480 = vadd.s32 %v459, 168
          %v481 = vadd.s32 %v459, 176
          %v482 = vadd.s32 %v459, 184
          %v483 = vadd.s32 %v459, 192
          %v484 = vadd.s32 %v459, 200
          %v485 = vadd.s32 %v459, 208
          %v486 = vadd.s32 %v459, 216
          %v487 = vadd.s32 %v459, 224
          %v488 = vadd.s32 %v459, 232
          %v489 = vadd.s32 %v459, 240
          %v490 = vadd.s32 %v459, 248
          loop: start=0, step=1, limit=3
          $region56: #{tpu_custom_call.1} parent=54 // loop_pre_header
            _
          $region57: #{tpu_custom_call.1} parent=54 // loop_header
            %s492 = sphi 0, %s496
            %p493 = scmp.ge.s32.totalorder %s492, 3
            %v497 = vphi 0.0, %v758
          $region58: #{tpu_custom_call.1} parent=54 // loop_header_branch
            %495 = sbr.rel (%p493) target = $region62
          $region59: #{tpu_custom_call.1} parent=54 // loop_body
            %s498 = smul.u32 %s492, 256
            %s499 = scalar_lea.vmem %s213, %s498 [#allocation2]
            %v500 = vld [vmem:[%s499] sm:$0xff]
            %v501 = vld [vmem:[%s499 + $0x8] sm:$0xff]
            %v502 = vld [vmem:[%s499 + $0x10] sm:$0xff]
            %v503 = vld [vmem:[%s499 + $0x18] sm:$0xff]
            %v504 = vld [vmem:[%s499 + $0x20] sm:$0xff]
            %v505 = vld [vmem:[%s499 + $0x28] sm:$0xff]
            %v506 = vld [vmem:[%s499 + $0x30] sm:$0xff]
            %v507 = vld [vmem:[%s499 + $0x38] sm:$0xff]
            %v508 = vld [vmem:[%s499 + $0x40] sm:$0xff]
            %v509 = vld [vmem:[%s499 + $0x48] sm:$0xff]
            %v510 = vld [vmem:[%s499 + $0x50] sm:$0xff]
            %v511 = vld [vmem:[%s499 + $0x58] sm:$0xff]
            %v512 = vld [vmem:[%s499 + $0x60] sm:$0xff]
            %v513 = vld [vmem:[%s499 + $0x68] sm:$0xff]
            %v514 = vld [vmem:[%s499 + $0x70] sm:$0xff]
            %v515 = vld [vmem:[%s499 + $0x78] sm:$0xff]
            %v516 = vld [vmem:[%s499 + $0x80] sm:$0xff]
            %v517 = vld [vmem:[%s499 + $0x88] sm:$0xff]
            %v518 = vld [vmem:[%s499 + $0x90] sm:$0xff]
            %v519 = vld [vmem:[%s499 + $0x98] sm:$0xff]
            %v520 = vld [vmem:[%s499 + $0xa0] sm:$0xff]
            %v521 = vld [vmem:[%s499 + $0xa8] sm:$0xff]
            %v522 = vld [vmem:[%s499 + $0xb0] sm:$0xff]
            %v523 = vld [vmem:[%s499 + $0xb8] sm:$0xff]
            %v524 = vld [vmem:[%s499 + $0xc0] sm:$0xff]
            %v525 = vld [vmem:[%s499 + $0xc8] sm:$0xff]
            %v526 = vld [vmem:[%s499 + $0xd0] sm:$0xff]
            %v527 = vld [vmem:[%s499 + $0xd8] sm:$0xff]
            %v528 = vld [vmem:[%s499 + $0xe0] sm:$0xff]
            %v529 = vld [vmem:[%s499 + $0xe8] sm:$0xff]
            %v530 = vld [vmem:[%s499 + $0xf0] sm:$0xff]
            %v531 = vld [vmem:[%s499 + $0xf8] sm:$0xff]
            %s532 = scalar_lea.vmem %s223, %s498 [#allocation5]
            %v533 = vld [vmem:[%s532] sm:$0xff]
            %v534 = vld [vmem:[%s532 + $0x8] sm:$0xff]
            %v535 = vld [vmem:[%s532 + $0x10] sm:$0xff]
            %v536 = vld [vmem:[%s532 + $0x18] sm:$0xff]
            %v537 = vld [vmem:[%s532 + $0x20] sm:$0xff]
            %v538 = vld [vmem:[%s532 + $0x28] sm:$0xff]
            %v539 = vld [vmem:[%s532 + $0x30] sm:$0xff]
            %v540 = vld [vmem:[%s532 + $0x38] sm:$0xff]
            %v541 = vld [vmem:[%s532 + $0x40] sm:$0xff]
            %v542 = vld [vmem:[%s532 + $0x48] sm:$0xff]
            %v543 = vld [vmem:[%s532 + $0x50] sm:$0xff]
            %v544 = vld [vmem:[%s532 + $0x58] sm:$0xff]
            %v545 = vld [vmem:[%s532 + $0x60] sm:$0xff]
            %v546 = vld [vmem:[%s532 + $0x68] sm:$0xff]
            %v547 = vld [vmem:[%s532 + $0x70] sm:$0xff]
            %v548 = vld [vmem:[%s532 + $0x78] sm:$0xff]
            %v549 = vld [vmem:[%s532 + $0x80] sm:$0xff]
            %v550 = vld [vmem:[%s532 + $0x88] sm:$0xff]
            %v551 = vld [vmem:[%s532 + $0x90] sm:$0xff]
            %v552 = vld [vmem:[%s532 + $0x98] sm:$0xff]
            %v553 = vld [vmem:[%s532 + $0xa0] sm:$0xff]
            %v554 = vld [vmem:[%s532 + $0xa8] sm:$0xff]
            %v555 = vld [vmem:[%s532 + $0xb0] sm:$0xff]
            %v556 = vld [vmem:[%s532 + $0xb8] sm:$0xff]
            %v557 = vld [vmem:[%s532 + $0xc0] sm:$0xff]
            %v558 = vld [vmem:[%s532 + $0xc8] sm:$0xff]
            %v559 = vld [vmem:[%s532 + $0xd0] sm:$0xff]
            %v560 = vld [vmem:[%s532 + $0xd8] sm:$0xff]
            %v561 = vld [vmem:[%s532 + $0xe0] sm:$0xff]
            %v562 = vld [vmem:[%s532 + $0xe8] sm:$0xff]
            %v563 = vld [vmem:[%s532 + $0xf0] sm:$0xff]
            %v564 = vld [vmem:[%s532 + $0xf8] sm:$0xff]
            %v565 = vsub.f32 %v500, %v533
            %v566 = vsub.f32 %v501, %v534
            %v567 = vsub.f32 %v502, %v535
            %v568 = vsub.f32 %v503, %v536
            %v569 = vsub.f32 %v504, %v537
            %v570 = vsub.f32 %v505, %v538
            %v571 = vsub.f32 %v506, %v539
            %v572 = vsub.f32 %v507, %v540
            %v573 = vsub.f32 %v508, %v541
            %v574 = vsub.f32 %v509, %v542
            %v575 = vsub.f32 %v510, %v543
            %v576 = vsub.f32 %v511, %v544
            %v577 = vsub.f32 %v512, %v545
            %v578 = vsub.f32 %v513, %v546
            %v579 = vsub.f32 %v514, %v547
            %v580 = vsub.f32 %v515, %v548
            %v581 = vsub.f32 %v516, %v549
            %v582 = vsub.f32 %v517, %v550
            %v583 = vsub.f32 %v518, %v551
            %v584 = vsub.f32 %v519, %v552
            %v585 = vsub.f32 %v520, %v553
            %v586 = vsub.f32 %v521, %v554
            %v587 = vsub.f32 %v522, %v555
            %v588 = vsub.f32 %v523, %v556
            %v589 = vsub.f32 %v524, %v557
            %v590 = vsub.f32 %v525, %v558
            %v591 = vsub.f32 %v526, %v559
            %v592 = vsub.f32 %v527, %v560
            %v593 = vsub.f32 %v528, %v561
            %v594 = vsub.f32 %v529, %v562
            %v595 = vsub.f32 %v530, %v563
            %v596 = vsub.f32 %v531, %v564
            %v597 = vmul.f32 %v565, %v565
            %v598 = vmul.f32 %v566, %v566
            %v599 = vmul.f32 %v567, %v567
            %v600 = vmul.f32 %v568, %v568
            %v601 = vmul.f32 %v569, %v569
            %v602 = vmul.f32 %v570, %v570
            %v603 = vmul.f32 %v571, %v571
            %v604 = vmul.f32 %v572, %v572
            %v605 = vmul.f32 %v573, %v573
            %v606 = vmul.f32 %v574, %v574
            %v607 = vmul.f32 %v575, %v575
            %v608 = vmul.f32 %v576, %v576
            %v609 = vmul.f32 %v577, %v577
            %v610 = vmul.f32 %v578, %v578
            %v611 = vmul.f32 %v579, %v579
            %v612 = vmul.f32 %v580, %v580
            %v613 = vmul.f32 %v581, %v581
            %v614 = vmul.f32 %v582, %v582
            %v615 = vmul.f32 %v583, %v583
            %v616 = vmul.f32 %v584, %v584
            %v617 = vmul.f32 %v585, %v585
            %v618 = vmul.f32 %v586, %v586
            %v619 = vmul.f32 %v587, %v587
            %v620 = vmul.f32 %v588, %v588
            %v621 = vmul.f32 %v589, %v589
            %v622 = vmul.f32 %v590, %v590
            %v623 = vmul.f32 %v591, %v591
            %v624 = vmul.f32 %v592, %v592
            %v625 = vmul.f32 %v593, %v593
            %v626 = vmul.f32 %v594, %v594
            %v627 = vmul.f32 %v595, %v595
            %v628 = vmul.f32 %v596, %v596
            %v629 = vstv %s498
            %v630 = vadd.s32 %v459, %v629
            %v631 = vadd.s32 %v460, %v629
            %v632 = vadd.s32 %v461, %v629
            %v633 = vadd.s32 %v462, %v629
            %v634 = vadd.s32 %v463, %v629
            %v635 = vadd.s32 %v464, %v629
            %v636 = vadd.s32 %v465, %v629
            %v637 = vadd.s32 %v466, %v629
            %v638 = vadd.s32 %v467, %v629
            %v639 = vadd.s32 %v468, %v629
            %v640 = vadd.s32 %v469, %v629
            %v641 = vadd.s32 %v470, %v629
            %v642 = vadd.s32 %v471, %v629
            %v643 = vadd.s32 %v472, %v629
            %v644 = vadd.s32 %v473, %v629
            %v645 = vadd.s32 %v474, %v629
            %v646 = vadd.s32 %v475, %v629
            %v647 = vadd.s32 %v476, %v629
            %v648 = vadd.s32 %v477, %v629
            %v649 = vadd.s32 %v478, %v629
            %v650 = vadd.s32 %v479, %v629
            %v651 = vadd.s32 %v480, %v629
            %v652 = vadd.s32 %v481, %v629
            %v653 = vadd.s32 %v482, %v629
            %v654 = vadd.s32 %v483, %v629
            %v655 = vadd.s32 %v484, %v629
            %v656 = vadd.s32 %v485, %v629
            %v657 = vadd.s32 %v486, %v629
            %v658 = vadd.s32 %v487, %v629
            %v659 = vadd.s32 %v488, %v629
            %v660 = vadd.s32 %v489, %v629
            %v661 = vadd.s32 %v490, %v629
            %v662 = vstv %s273
            %vm663 = vcmp.lt.s32.totalorder %v630, %v662
            %vm664 = vcmp.lt.s32.totalorder %v631, %v662
            %vm665 = vcmp.lt.s32.totalorder %v632, %v662
            %vm666 = vcmp.lt.s32.totalorder %v633, %v662
            %vm667 = vcmp.lt.s32.totalorder %v634, %v662
            %vm668 = vcmp.lt.s32.totalorder %v635, %v662
            %vm669 = vcmp.lt.s32.totalorder %v636, %v662
            %vm670 = vcmp.lt.s32.totalorder %v637, %v662
            %vm671 = vcmp.lt.s32.totalorder %v638, %v662
            %vm672 = vcmp.lt.s32.totalorder %v639, %v662
            %vm673 = vcmp.lt.s32.totalorder %v640, %v662
            %vm674 = vcmp.lt.s32.totalorder %v641, %v662
            %vm675 = vcmp.lt.s32.totalorder %v642, %v662
            %vm676 = vcmp.lt.s32.totalorder %v643, %v662
            %vm677 = vcmp.lt.s32.totalorder %v644, %v662
            %vm678 = vcmp.lt.s32.totalorder %v645, %v662
            %vm679 = vcmp.lt.s32.totalorder %v646, %v662
            %vm680 = vcmp.lt.s32.totalorder %v647, %v662
            %vm681 = vcmp.lt.s32.totalorder %v648, %v662
            %vm682 = vcmp.lt.s32.totalorder %v649, %v662
            %vm683 = vcmp.lt.s32.totalorder %v650, %v662
            %vm684 = vcmp.lt.s32.totalorder %v651, %v662
            %vm685 = vcmp.lt.s32.totalorder %v652, %v662
            %vm686 = vcmp.lt.s32.totalorder %v653, %v662
            %vm687 = vcmp.lt.s32.totalorder %v654, %v662
            %vm688 = vcmp.lt.s32.totalorder %v655, %v662
            %vm689 = vcmp.lt.s32.totalorder %v656, %v662
            %vm690 = vcmp.lt.s32.totalorder %v657, %v662
            %vm691 = vcmp.lt.s32.totalorder %v658, %v662
            %vm692 = vcmp.lt.s32.totalorder %v659, %v662
            %vm693 = vcmp.lt.s32.totalorder %v660, %v662
            %vm694 = vcmp.lt.s32.totalorder %v661, %v662
            %v695 = vsel %vm663, %v597, 0.0
            %v696 = vsel %vm664, %v598, 0.0
            %v697 = vsel %vm665, %v599, 0.0
            %v698 = vsel %vm666, %v600, 0.0
            %v699 = vsel %vm667, %v601, 0.0
            %v700 = vsel %vm668, %v602, 0.0
            %v701 = vsel %vm669, %v603, 0.0
            %v702 = vsel %vm670, %v604, 0.0
            %v703 = vsel %vm671, %v605, 0.0
            %v704 = vsel %vm672, %v606, 0.0
            %v705 = vsel %vm673, %v607, 0.0
            %v706 = vsel %vm674, %v608, 0.0
            %v707 = vsel %vm675, %v609, 0.0
            %v708 = vsel %vm676, %v610, 0.0
            %v709 = vsel %vm677, %v611, 0.0
            %v710 = vsel %vm678, %v612, 0.0
            %v711 = vsel %vm679, %v613, 0.0
            %v712 = vsel %vm680, %v614, 0.0
            %v713 = vsel %vm681, %v615, 0.0
            %v714 = vsel %vm682, %v616, 0.0
            %v715 = vsel %vm683, %v617, 0.0
            %v716 = vsel %vm684, %v618, 0.0
            %v717 = vsel %vm685, %v619, 0.0
            %v718 = vsel %vm686, %v620, 0.0
            %v719 = vsel %vm687, %v621, 0.0
            %v720 = vsel %vm688, %v622, 0.0
            %v721 = vsel %vm689, %v623, 0.0
            %v722 = vsel %vm690, %v624, 0.0
            %v723 = vsel %vm691, %v625, 0.0
            %v724 = vsel %vm692, %v626, 0.0
            %v725 = vsel %vm693, %v627, 0.0
            %v726 = vsel %vm694, %v628, 0.0
            %v727 = vadd.f32 %v695, %v696
            %v728 = vadd.f32 %v727, %v697
            %v729 = vadd.f32 %v728, %v698
            %v730 = vadd.f32 %v729, %v699
            %v731 = vadd.f32 %v730, %v700
            %v732 = vadd.f32 %v731, %v701
            %v733 = vadd.f32 %v732, %v702
            %v734 = vadd.f32 %v733, %v703
            %v735 = vadd.f32 %v734, %v704
            %v736 = vadd.f32 %v735, %v705
            %v737 = vadd.f32 %v736, %v706
            %v738 = vadd.f32 %v737, %v707
            %v739 = vadd.f32 %v738, %v708
            %v740 = vadd.f32 %v739, %v709
            %v741 = vadd.f32 %v740, %v710
            %v742 = vadd.f32 %v741, %v711
            %v743 = vadd.f32 %v742, %v712
            %v744 = vadd.f32 %v743, %v713
            %v745 = vadd.f32 %v744, %v714
            %v746 = vadd.f32 %v745, %v715
            %v747 = vadd.f32 %v746, %v716
            %v748 = vadd.f32 %v747, %v717
            %v749 = vadd.f32 %v748, %v718
            %v750 = vadd.f32 %v749, %v719
            %v751 = vadd.f32 %v750, %v720
            %v752 = vadd.f32 %v751, %v721
            %v753 = vadd.f32 %v752, %v722
            %v754 = vadd.f32 %v753, %v723
            %v755 = vadd.f32 %v754, %v724
            %v756 = vadd.f32 %v755, %v725
            %v757 = vadd.f32 %v756, %v726
            %v758 = vadd.f32 %v497, %v757
          $region60: #{tpu_custom_call.1} parent=54 // loop_footer
            %s496 = sadd.s32 1, %s492
          $region61: #{tpu_custom_call.1} parent=54 // loop_footer_branch
            %491 = sbr.rel target = $region57
          $region62: #{tpu_custom_call.1} parent=54 // loop_exit
            _
          %v759 = vadd.f32 %v457, %v497
          %760 = vst [vmem:[%s249] sm:$0xff] %v759
        $region55: #{tpu_custom_call.1} parent=27 // pred_fallthru
          _
        %s761 = sand.u32 %s106, 1
        %s762 = scalar_lea.sflag [#allocation4], %s761
        %s763 = sand.u32 %s106, 1
        %s764 = smul.addr %s763, 8
        %s765 = scalar_lea.vmem [#allocation7], %s764
        // Predicated region
        $region63: #{tpu_custom_call.1} parent=27 // pred_check
          %p766 = pneg %p116
        $region64: #{tpu_custom_call.1} parent=27 // pred_check_branch
          %768 = sbr.rel (%p766) target = $region66
        $region65: #{tpu_custom_call.1} parent=27 // pred_region
          %770 = vsyncadd %s762, 0
          %s771 = smul.addr %s26, 8
          %s772 = scalar_lea.hbm %s2, %s771
          %s774 = sshll.u32 %s765, 4
          %s775 = int_to_ptr.vmem [resolvable:$true] %s774
          %s776 = sshll.u32 %s772, 4
          %s777 = int_to_ptr.hbm [resolvable:$true] %s776
          %779 = dma.vmem_to_hbm [thread:$0]  %s775, 128, %s777, %s762
        $region66: #{tpu_custom_call.1} parent=27 // pred_fallthru
          _
      $region28: #{tpu_custom_call.1} parent=5 // pred_fallthru
        _
      %p780 = scmp.le.s32.totalorder 2, %s17
      // Predicated region
      $region67: #{tpu_custom_call.1} parent=5 // pred_check
        %p781 = pneg %p780
      $region68: #{tpu_custom_call.1} parent=5 // pred_check_branch
        %783 = sbr.rel (%p781) target = $region70
      $region69: #{tpu_custom_call.1} parent=5 // pred_region
        %s784 = ssub.s32 %s17, 2
        // Predicated region
        $region71: #{tpu_custom_call.1} parent=69 // pred_check
          %p785 = pneg %p122
        $region72: #{tpu_custom_call.1} parent=69 // pred_check_branch
          %787 = sbr.rel (%p785) target = $region74
        $region73: #{tpu_custom_call.1} parent=69 // pred_region
          %s788 = sand.u32 %s107, 1
          %s789 = scalar_lea.sflag [#allocation4], %s788
          %s790 = sand.u32 %s107, 1
          %s791 = smul.addr %s790, 8
          %s792 = scalar_lea.vmem [#allocation7], %s791
          %794 = dma.done %s789, 128
        $region74: #{tpu_custom_call.1} parent=69 // pred_fallthru
          _
      $region70: #{tpu_custom_call.1} parent=5 // pred_fallthru
        _
    $region6: #{tpu_custom_call.1} parent=1 // loop_footer
      %s21 = sadd.s32 1, %s17
    $region7: #{tpu_custom_call.1} parent=1 // loop_footer_branch
      %16 = sbr.rel target = $region3
    $region8: #{tpu_custom_call.1} parent=1 // loop_exit
      _
    %795 = vsyncpa [#allocation3], 1
    %s796 = scalar_lea.sflag [#allocation3], 1
    %797 = vsyncpa %s796, 1
    %798 = vsyncpa [#allocation6], 1
    %s799 = scalar_lea.sflag [#allocation6], 1
    %800 = vsyncpa %s799, 1
    %801 = vsyncpa [#allocation4], 1
    %s802 = scalar_lea.sflag [#allocation4], 1
    %803 = vsyncpa %s802, 1

</llo_original>
